<compile_context>
chip_gen: v7x
topology: tpu7x:2x2x1
jax: 0.10.0
libtpu: 0.0.40
codegen_flags: <defaults>
</compile_context>

<pallas_src>
import numpy as np
import jax
import jax.numpy as jnp
from jax.experimental import pallas as pl
from jax.experimental.pallas import tpu as pltpu

N_FFT = 512
HOP = 160
N_FREQ = N_FFT // 2 + 1          # 257 (onesided)
F_PAD = 384                      # 257 rounded up to a lane multiple (3 * 128)
EPS = 1e-6


def _round_up(x: int, m: int) -> int:
    return (x + m - 1) // m * m


def _cdiv(a: int, b: int) -> int:
    return -(-a // b)


def _spectrogram_kernel(frames_ref, w_ref, out_ref):
    # frames_ref: (1, TF, N_FFT) bf16   w_ref: (N_FFT, 2*F_PAD) bf16
    # out_ref:    (1, TF, F_PAD) f32    (frame-major, 384 lanes -> unmasked vst)
    f = frames_ref[0]                                                 # (TF, N_FFT)
    r = jnp.dot(f, w_ref[...], preferred_element_type=jnp.float32)    # (TF, 2*F_PAD)
    re = r[:, :F_PAD]                                                 # 128-aligned slices
    im = r[:, F_PAD:]
    out_ref[0] = re * re + im * im + EPS                              # f32 power + eps


def _dft_weights(n_fft: int, n_freq: int, f_pad: int) -> jax.Array:
    """Fused windowed-DFT matrix [win*cos | win*sin], (n_fft, 2*f_pad), bf16."""
    n = np.arange(n_fft, dtype=np.float64)
    # torch.hamming_window defaults: periodic=True, alpha=0.54, beta=0.46
    window = 0.54 - 0.46 * np.cos(2.0 * np.pi * n / n_fft)
    k = np.arange(n_freq, dtype=np.float64)
    ang = 2.0 * np.pi * np.outer(n, k) / n_fft                        # (n_fft, n_freq)
    w = np.zeros((n_fft, 2 * f_pad), dtype=np.float32)
    w[:, :n_freq] = (window[:, None] * np.cos(ang)).astype(np.float32)
    w[:, f_pad:f_pad + n_freq] = (window[:, None] * np.sin(ang)).astype(np.float32)
    return jnp.asarray(w).astype(jnp.bfloat16)


def _pick_tf(batch: int, n_frames: int) -> int:
    """Frame-tile size: big tiles for long inputs, >=4 grid steps when possible
    (v7x has 2 TensorCores that shard 'parallel' grid axes)."""
    nf8 = _round_up(n_frames, 8)
    if nf8 <= 128:
        return nf8                       # tiny input: single un-padded tile per batch row
    for tf in (512, 256, 128):
        if batch * _cdiv(nf8, tf) >= 4:
            return tf
    return 128


def spectrogram(x: jax.Array, n_fft: int = N_FFT, hop_length: int = HOP) -> jax.Array:
    """(B, time) waveform -> (B, n_freq, n_frames) power spectrogram + 1e-6 (f32)."""
    x = x.astype(jnp.float32)
    B, T = x.shape
    pad = n_fft // 2
    assert T > pad, "reflect padding (center=True) requires time > n_fft // 2"

    # center=True, pad_mode='reflect' framing (glue, plain JAX).
    xp = jnp.pad(x, ((0, 0), (pad, pad)), mode="reflect")
    n_frames = 1 + T // hop_length

    TF = _pick_tf(B, n_frames)
    nf_pad = _round_up(n_frames, TF)

    # Build (B, nf_pad, n_fft) bf16 frames with shifted reshapes + concat:
    #   frame[j, :] = xp[j*hop : j*hop + n_fft]
    # TODO(synk): overlapping hop<n_fft windows are not expressible as a Blocked
    # BlockSpec, so frame extraction stays in the JAX wrapper.
    q, rem = divmod(n_fft, hop_length)                  # 3, 32
    n_rows = (nf_pad + q) if rem else (nf_pad + q - 1)
    total = n_rows * hop_length
    cur = xp.shape[1]
    if cur < total:
        xp = jnp.pad(xp, ((0, 0), (0, total - cur)))
    else:
        xp = xp[:, :total]
    rows = xp.reshape(B, n_rows, hop_length).astype(jnp.bfloat16)
    pieces = [rows[:, p:p + nf_pad, :] for p in range(q)]
    if rem:
        pieces.append(rows[:, q:q + nf_pad, :rem])
    frames = jnp.concatenate(pieces, axis=-1)           # (B, nf_pad, n_fft) bf16

    w = _dft_weights(n_fft, N_FREQ, F_PAD)              # (n_fft, 2*F_PAD) bf16, constant

    grid = (B, nf_pad // TF)
    flops = 2 * B * nf_pad * n_fft * (2 * F_PAD) + 3 * B * nf_pad * F_PAD
    bytes_accessed = 2 * frames.size + 2 * w.size + 4 * B * nf_pad * F_PAD

    out = pl.pallas_call(
        _spectrogram_kernel,
        out_shape=jax.ShapeDtypeStruct((B, nf_pad, F_PAD), jnp.float32),
        grid_spec=pltpu.PrefetchScalarGridSpec(
            num_scalar_prefetch=0,
            grid=grid,
            in_specs=[
                pl.BlockSpec((1, TF, n_fft), lambda b, t: (b, t, 0)),
                # Constant block index -> DFT weights stay resident in VMEM.
                pl.BlockSpec((n_fft, 2 * F_PAD), lambda b, t: (0, 0)),
            ],
            out_specs=pl.BlockSpec((1, TF, F_PAD), lambda b, t: (b, t, 0)),
        ),
        compiler_params=pltpu.CompilerParams(
            dimension_semantics=("parallel", "parallel")),
        cost_estimate=pl.CostEstimate(
            flops=flops, transcendentals=0, bytes_accessed=bytes_accessed),
    )(frames, w)

    # Drop padded frames / freq bins and move to (B, freq, frame); the slice and
    # transpose fuse into a single copy since the kernel output is frame-major.
    y = out[:, :n_frames, :N_FREQ]
    return jnp.transpose(y, (0, 2, 1))


if __name__ == "__main__":
    key = jax.random.PRNGKey(0)
    # batch of 2 waveforms, 1600 samples -> n_frames = 1 + 1600 // 160 = 11
    x = jax.random.normal(key, (2, 1600), dtype=jnp.float32)
    spec_fn = jax.jit(spectrogram)
    y = spec_fn(x)
    jax.block_until_ready(y)
    assert y.shape == (2, N_FREQ, 1 + x.shape[1] // HOP), y.shape
    assert bool(jnp.all(jnp.isfinite(y)))
    assert bool(jnp.all(y >= EPS * 0.5))   # power + eps must be positive
    print("KERNEL_OK")
</pallas_src>

<mosaic_0001>
module attributes {stable_mosaic.version = 11 : i64} {
  func.func @_spectrogram_kernel(%arg0: i32, %arg1: i32, %arg2: memref<1x16x512xbf16, #tpu.memory_space<vmem>>, %arg3: memref<512x768xbf16, #tpu.memory_space<vmem>>, %arg4: memref<1x16x384xf32, #tpu.memory_space<vmem>>) attributes {dimension_semantics = [#tpu.dimension_semantics<parallel>, #tpu.dimension_semantics<parallel>], iteration_bounds = array<i64: 2, 1>, scalar_prefetch = 0 : i64, scratch_operands = 0 : i64, tpu.core_type = #tpu.core_type<tc>, window_params = [{transform_indices = @transform_0, window_bounds = array<i64: 1, 16, 512>}, {pipeline_mode = #tpu.pipeline_mode<synchronous>, transform_indices = @transform_1, window_bounds = array<i64: 512, 768>}, {transform_indices = @transform_2, window_bounds = array<i64: 1, 16, 384>}]} {
    %c0 = arith.constant 0 : index
    %c0_0 = arith.constant 0 : index
    %c0_1 = arith.constant 0 : index
    %0 = vector.load %arg2[%c0, %c0_0, %c0_1] : memref<1x16x512xbf16, #tpu.memory_space<vmem>>, vector<1x16x512xbf16>
    %1 = vector.shape_cast %0 : vector<1x16x512xbf16> to vector<16x512xbf16>
    %c0_2 = arith.constant 0 : index
    %c0_3 = arith.constant 0 : index
    %2 = vector.load %arg3[%c0_2, %c0_3] : memref<512x768xbf16, #tpu.memory_space<vmem>>, vector<512x768xbf16>
    %cst = arith.constant dense<0.000000e+00> : vector<16x768xf32>
    %3 = tpu.matmul %1, %2, %cst {dimension_numbers = #tpu.dot_dimension_numbers<[1], [0], [0], [1], [0, 0, 1, 1], [], []>} : vector<16x512xbf16>, vector<512x768xbf16>, vector<16x768xf32> -> vector<16x768xf32>
    %4 = vector.extract_strided_slice %3 {offsets = [0, 0], sizes = [16, 384], strides = [1, 1]} : vector<16x768xf32> to vector<16x384xf32>
    %5 = vector.extract_strided_slice %3 {offsets = [0, 384], sizes = [16, 384], strides = [1, 1]} : vector<16x768xf32> to vector<16x384xf32>
    %6 = arith.mulf %4, %4 : vector<16x384xf32>
    %7 = arith.mulf %5, %5 : vector<16x384xf32>
    %8 = arith.addf %6, %7 : vector<16x384xf32>
    %cst_4 = arith.constant 9.99999997E-7 : f32
    %9 = vector.broadcast %cst_4 : f32 to vector<16x384xf32>
    %10 = arith.addf %8, %9 : vector<16x384xf32>
    %c0_5 = arith.constant 0 : index
    %c0_6 = arith.constant 0 : index
    %c0_7 = arith.constant 0 : index
    %11 = vector.load %arg4[%c0_5, %c0_6, %c0_7] : memref<1x16x384xf32, #tpu.memory_space<vmem>>, vector<1x16x384xf32>
    %12 = vector.shape_cast %11 : vector<1x16x384xf32> to vector<16x384xf32>
    %13 = vector.shape_cast %10 : vector<16x384xf32> to vector<1x16x384xf32>
    tpu.vector_store %arg4[%c0_5, %c0_6, %c0_7], %13 {strides = array<i32>} : memref<1x16x384xf32, #tpu.memory_space<vmem>>, vector<1x16x384xf32>,
    return
  }
  func.func @transform_0(%arg0: i32, %arg1: i32) -> (i32, i32, i32) {
    %c0_i32 = arith.constant 0 : i32
    %c0_i32_0 = arith.constant 0 : i32
    return %arg0, %arg1, %c0_i32 : i32, i32, i32
  }
  func.func @transform_1(%arg0: i32, %arg1: i32) -> (i32, i32) {
    %c0_i32 = arith.constant 0 : i32
    %c0_i32_0 = arith.constant 0 : i32
    %c0_i32_1 = arith.constant 0 : i32
    return %c0_i32, %c0_i32_0 : i32, i32
  }
  func.func @transform_2(%arg0: i32, %arg1: i32) -> (i32, i32, i32) {
    %c0_i32 = arith.constant 0 : i32
    %c0_i32_0 = arith.constant 0 : i32
    return %arg0, %arg1, %c0_i32 : i32, i32, i32
  }
}

</mosaic_0001>

<llo_original>
// kernel: spectrogram.1
$region0: #{spectrogram.1}
  #allocation0 [shape = 'u32[]', space=smem, size = 0x4, offset = 0x4, fixed_abs, tag = 'smem constant byte address 0x4 - core index']
  #allocation1 [shape = 'u32[144,128]{1,0:T(1,128)}', space=vmem, size = 0x12000, scoped, tag = 'internal scratch']
  %s0 = inlined_call_operand.vmem [shape: bf16[2,16,512], index: 0, kind: input, shape index: {}]
  %s1 = inlined_call_operand.vmem [shape: bf16[512,768], index: 1, kind: input, shape index: {}]
  %s2 = inlined_call_operand.vmem [shape: f32[2,16,384], index: 2, kind: output, shape index: {}]
  %s3 = sld [smem:[#allocation0]]
  $region41: #{spectrogram.1} parent=0
    _
  %s5 = ssub.s32 1, %s3
  %s6 = scalar_select 0, %s5, %s3
  loop: start=0, step=1, limit=4
  $region2: #{spectrogram.1} parent=0 // loop_pre_header
    _
  $region3: #{spectrogram.1} parent=0 // loop_header
    %s8 = sphi 0, %s12
    %p9 = scmp.ge.s32.totalorder %s8, 4
    %s15 = sphi 0, %s27
    %s16 = sphi 0, %s23
    %s17 = sphi 0, %s15
    %s18 = sphi 0, %s16
    %s19 = sphi 0, %s17
    %s20 = sphi 0, %s18
    %s32 = sphi 0, %s34
    %s35 = sphi 0, %s32
    %s36 = sphi 0, %s35
    %s52 = sphi 0, %s36
    %s56 = sphi 0, %s56
    %s58 = sphi 0, %s56
    %s59 = sphi 0, %s58
    %s73 = sphi 0, %s59
    %s81 = sphi 0, %s83
    %s84 = sphi 0, %s81
    %s85 = sphi 0, %s84
    %s101 = sphi 0, %s85
  $region4: #{spectrogram.1} parent=0 // loop_header_branch
    %11 = sbr.rel (%p9) target = $region8
  $region5: #{spectrogram.1} parent=0 // loop_body
    %s13 = ssub.s32 %s8, 1
    %s14 = ssub.s32 %s8, 2
    %s21 = sadd.s32 1, %s16
    %p22 = scmp.ge.s32.totalorder %s21, 1
    %s23 = scalar_select %p22, 0, %s21
    %s24 = sadd.s32 1, %s15
    %s25 = scalar_select %p22, %s24, %s15
    %p26 = scmp.ge.s32.totalorder %s25, 2
    %s27 = scalar_select %p26, 0, %s25
    %s28 = ssub.s32 %s15, %s27
    %s29 = ssub.s32 %s16, %s23
    %s30 = sor.u32 %s28, %s29
    %p31 = scmp.eq.s32.totalorder %s30, 0
    %s33 = sadd.s32 %s32, 1
    %s34 = scalar_select %p31, %s32, %s33
    %p37 = pneg %p31
    %p38 = scmp.eq.s32.totalorder %s8, 1
    %p39 = por %p37, %p38
    %p40 = scmp.ne.s32.totalorder %s32, %s35
    %p41 = scmp.eq.s32.totalorder %s8, 0
    %p42 = por %p40, %p41
    %p43 = scmp.ne.s32.totalorder %s32, %s35
    %p44 = scmp.eq.s32.totalorder %s13, 1
    %p45 = por %p43, %p44
    %p46 = scmp.ne.s32.totalorder %s35, %s36
    %p47 = scmp.eq.s32.totalorder %s13, 0
    %p48 = por %p46, %p47
    %p49 = scmp.ne.s32.totalorder %s35, %s36
    %p50 = scmp.eq.s32.totalorder %s14, 1
    %p51 = por %p49, %p50
    %p53 = scmp.ne.s32.totalorder %s36, %s52
    %p54 = scmp.eq.s32.totalorder %s14, 0
    %p55 = por %p53, %p54
    %s57 = sadd.s32 %s56, 1
    %p60 = scmp.eq.s32.totalorder %s8, 1
    %p61 = scmp.ne.s32.totalorder %s56, %s58
    %p62 = scmp.eq.s32.totalorder %s8, 0
    %p63 = por %p61, %p62
    %p64 = scmp.ne.s32.totalorder %s56, %s58
    %p65 = scmp.eq.s32.totalorder %s13, 1
    %p66 = por %p64, %p65
    %p67 = scmp.ne.s32.totalorder %s58, %s59
    %p68 = scmp.eq.s32.totalorder %s13, 0
    %p69 = por %p67, %p68
    %p70 = scmp.ne.s32.totalorder %s58, %s59
    %p71 = scmp.eq.s32.totalorder %s14, 1
    %p72 = por %p70, %p71
    %p74 = scmp.ne.s32.totalorder %s59, %s73
    %p75 = scmp.eq.s32.totalorder %s14, 0
    %p76 = por %p74, %p75
    %s77 = ssub.s32 %s15, %s27
    %s78 = ssub.s32 %s16, %s23
    %s79 = sor.u32 %s77, %s78
    %p80 = scmp.eq.s32.totalorder %s79, 0
    %s82 = sadd.s32 %s81, 1
    %s83 = scalar_select %p80, %s81, %s82
    %p86 = pneg %p80
    %p87 = scmp.eq.s32.totalorder %s8, 1
    %p88 = por %p86, %p87
    %p89 = scmp.ne.s32.totalorder %s81, %s84
    %p90 = scmp.eq.s32.totalorder %s8, 0
    %p91 = por %p89, %p90
    %p92 = scmp.ne.s32.totalorder %s81, %s84
    %p93 = scmp.eq.s32.totalorder %s13, 1
    %p94 = por %p92, %p93
    %p95 = scmp.ne.s32.totalorder %s84, %s85
    %p96 = scmp.eq.s32.totalorder %s13, 0
    %p97 = por %p95, %p96
    %p98 = scmp.ne.s32.totalorder %s84, %s85
    %p99 = scmp.eq.s32.totalorder %s14, 1
    %p100 = por %p98, %p99
    %p102 = scmp.ne.s32.totalorder %s85, %s101
    %p103 = scmp.eq.s32.totalorder %s14, 0
    %p104 = por %p102, %p103
    %p105 = scmp.le.s32.totalorder 1, %s8
    %p106 = scmp.lt.s32.totalorder %s8, 3
    %p107 = pnand %p105, %p106
    %p108 = pneg %p107
    // Predicated region
    $region9: #{spectrogram.1} parent=5 // pred_check
      _
    $region10: #{spectrogram.1} parent=5 // pred_check_branch
      %110 = sbr.rel (%p107) target = $region12
    $region11: #{spectrogram.1} parent=5 // pred_region
      %s111 = ssub.s32 %s8, 1
      // Predicated region
      $region13: #{spectrogram.1} parent=11 // pred_check
        %p112 = pneg %p69
      $region14: #{spectrogram.1} parent=11 // pred_check_branch
        %114 = sbr.rel (%p112) target = $region16
      $region15: #{spectrogram.1} parent=11 // pred_region
        _
      $region16: #{spectrogram.1} parent=11 // pred_fallthru
        _
    $region12: #{spectrogram.1} parent=5 // pred_fallthru
      _
    %p115 = scmp.lt.s32.totalorder %s8, 2
    // Predicated region
    $region17: #{spectrogram.1} parent=5 // pred_check
      %p116 = pneg %p115
    $region18: #{spectrogram.1} parent=5 // pred_check_branch
      %118 = sbr.rel (%p116) target = $region20
    $region19: #{spectrogram.1} parent=5 // pred_region
      // Predicated region
      $region21: #{spectrogram.1} parent=19 // pred_check
        %p119 = pneg %p42
      $region22: #{spectrogram.1} parent=19 // pred_check_branch
        %121 = sbr.rel (%p119) target = $region24
      $region23: #{spectrogram.1} parent=19 // pred_region
        %s122 = smul.u32 2, %s16
        %p123 = scmp.lt.s32.totalorder %s15, 1
        %s124 = scalar_select %p123, %s15, 1
        %p125 = scmp.lt.s32.totalorder %s122, 1
        %s126 = scalar_select %p125, %s122, 1
        %s127 = smul.addr %s126, 4
        %s128 = smul.addr %s124, 8
        %s129 = sadd.s32 %s127, %s128
        %s130 = smul.addr %s129, 4
        %s131 = scalar_lea.vmem %s0, %s130
        %s132 = smul.u32 2, %s16
      $region24: #{spectrogram.1} parent=19 // pred_fallthru
        _
    $region20: #{spectrogram.1} parent=5 // pred_fallthru
      _
    %p133 = scmp.le.s32.totalorder 1, %s8
    %p134 = scmp.lt.s32.totalorder %s8, 3
    %p135 = pnand %p133, %p134
    %p136 = pneg %p135
    // Predicated region
    $region25: #{spectrogram.1} parent=5 // pred_check
      _
    $region26: #{spectrogram.1} parent=5 // pred_check_branch
      %138 = sbr.rel (%p135) target = $region28
    $region27: #{spectrogram.1} parent=5 // pred_region
      %s139 = ssub.s32 %s8, 1
      %s140 = smul.u32 2, %s18
      %p141 = scmp.lt.s32.totalorder %s17, 1
      %s142 = scalar_select %p141, %s17, 1
      %p143 = scmp.lt.s32.totalorder %s140, 1
      %s144 = scalar_select %p143, %s140, 1
      %s145 = smul.addr %s144, 4
      %s146 = smul.addr %s142, 8
      %s147 = sadd.s32 %s145, %s146
      %s148 = smul.addr %s147, 4
      %s149 = scalar_lea.vmem %s0, %s148
      %p150 = pneg %p48
      %p151 = pneg %p45
      %p152 = pneg %p69
      %p153 = pneg %p66
      %p154 = pneg %p97
      %p155 = pneg %p94
      %s156 = smul.u32 2, %s18
      %p157 = scmp.lt.s32.totalorder %s17, 1
      %s158 = scalar_select %p157, %s17, 1
      %p159 = scmp.lt.s32.totalorder %s156, 1
      %s160 = scalar_select %p159, %s156, 1
      %s161 = smul.addr %s160, 3
      %s162 = smul.addr %s158, 6
      %s163 = sadd.s32 %s161, %s162
      %s164 = smul.addr %s163, 8
      %s165 = scalar_lea.vmem %s2, %s164
      %s166 = smul.u32 2, %s18
      %p167 = scmp.lt.s32.totalorder %s17, 1
      %s168 = scalar_select %p167, %s17, 1
      %p169 = scmp.lt.s32.totalorder %s166, 1
      %s170 = scalar_select %p169, %s166, 1
      %s171 = smul.addr %s170, 4
      %s172 = smul.addr %s168, 8
      %s173 = sadd.s32 %s171, %s172
      %s174 = smul.addr %s173, 4
      %s175 = scalar_lea.vmem %s0, %s174
      %s176 = smul.u32 2, %s18
      %s177 = smul.u32 2, %s18
      %p178 = scmp.lt.s32.totalorder %s17, 1
      %s179 = scalar_select %p178, %s17, 1
      %p180 = scmp.lt.s32.totalorder %s177, 1
      %s181 = scalar_select %p180, %s177, 1
      %s182 = smul.addr %s181, 3
      %s183 = smul.addr %s179, 6
      %s184 = sadd.s32 %s182, %s183
      %s185 = smul.addr %s184, 8
      %s186 = scalar_lea.vmem %s2, %s185
      %s187 = smul.u32 2, %s18
      %v188 = vld [vmem:[%s175] sm:$0xff]
      %v189 = vld [vmem:[%s175 + $0x8] sm:$0xff]
      %v190 = vld [vmem:[%s175 + $0x10] sm:$0xff]
      %v191 = vld [vmem:[%s175 + $0x18] sm:$0xff]
      %v192 = vld [vmem:[%s1] sm:$0xff]
      %v193 = vld [vmem:[%s1 + $0x8] sm:$0xff]
      %v194 = vld [vmem:[%s1 + $0x10] sm:$0xff]
      %v195 = vld [vmem:[%s1 + $0x18] sm:$0xff]
      %v196 = vld [vmem:[%s1 + $0x20] sm:$0xff]
      %v197 = vld [vmem:[%s1 + $0x28] sm:$0xff]
      %v198 = vld [vmem:[%s1 + $0x30] sm:$0xff]
      %v199 = vld [vmem:[%s1 + $0x38] sm:$0xff]
      %v200 = vld [vmem:[%s1 + $0x40] sm:$0xff]
      %v201 = vld [vmem:[%s1 + $0x48] sm:$0xff]
      %v202 = vld [vmem:[%s1 + $0x50] sm:$0xff]
      %v203 = vld [vmem:[%s1 + $0x58] sm:$0xff]
      %v204 = vld [vmem:[%s1 + $0x60] sm:$0xff]
      %v205 = vld [vmem:[%s1 + $0x68] sm:$0xff]
      %v206 = vld [vmem:[%s1 + $0x70] sm:$0xff]
      %v207 = vld [vmem:[%s1 + $0x78] sm:$0xff]
      %v208 = vld [vmem:[%s1 + $0x80] sm:$0xff]
      %v209 = vld [vmem:[%s1 + $0x88] sm:$0xff]
      %v210 = vld [vmem:[%s1 + $0x90] sm:$0xff]
      %v211 = vld [vmem:[%s1 + $0x98] sm:$0xff]
      %v212 = vld [vmem:[%s1 + $0xa0] sm:$0xff]
      %v213 = vld [vmem:[%s1 + $0xa8] sm:$0xff]
      %v214 = vld [vmem:[%s1 + $0xb0] sm:$0xff]
      %v215 = vld [vmem:[%s1 + $0xb8] sm:$0xff]
      %v216 = vld [vmem:[%s1 + $0xc0] sm:$0xff]
      %v217 = vld [vmem:[%s1 + $0xc8] sm:$0xff]
      %v218 = vld [vmem:[%s1 + $0xd0] sm:$0xff]
      %v219 = vld [vmem:[%s1 + $0xd8] sm:$0xff]
      %v220 = vld [vmem:[%s1 + $0xe0] sm:$0xff]
      %v221 = vld [vmem:[%s1 + $0xe8] sm:$0xff]
      %v222 = vld [vmem:[%s1 + $0xf0] sm:$0xff]
      %v223 = vld [vmem:[%s1 + $0xf8] sm:$0xff]
      %v224 = vld [vmem:[%s1 + $0x100] sm:$0xff]
      %v225 = vld [vmem:[%s1 + $0x108] sm:$0xff]
      %v226 = vld [vmem:[%s1 + $0x110] sm:$0xff]
      %v227 = vld [vmem:[%s1 + $0x118] sm:$0xff]
      %v228 = vld [vmem:[%s1 + $0x120] sm:$0xff]
      %v229 = vld [vmem:[%s1 + $0x128] sm:$0xff]
      %v230 = vld [vmem:[%s1 + $0x130] sm:$0xff]
      %v231 = vld [vmem:[%s1 + $0x138] sm:$0xff]
      %v232 = vld [vmem:[%s1 + $0x140] sm:$0xff]
      %v233 = vld [vmem:[%s1 + $0x148] sm:$0xff]
      %v234 = vld [vmem:[%s1 + $0x150] sm:$0xff]
      %v235 = vld [vmem:[%s1 + $0x158] sm:$0xff]
      %v236 = vld [vmem:[%s1 + $0x160] sm:$0xff]
      %v237 = vld [vmem:[%s1 + $0x168] sm:$0xff]
      %v238 = vld [vmem:[%s1 + $0x170] sm:$0xff]
      %v239 = vld [vmem:[%s1 + $0x178] sm:$0xff]
      %v240 = vld [vmem:[%s1 + $0x180] sm:$0xff]
      %v241 = vld [vmem:[%s1 + $0x188] sm:$0xff]
      %v242 = vld [vmem:[%s1 + $0x190] sm:$0xff]
      %v243 = vld [vmem:[%s1 + $0x198] sm:$0xff]
      %v244 = vld [vmem:[%s1 + $0x1a0] sm:$0xff]
      %v245 = vld [vmem:[%s1 + $0x1a8] sm:$0xff]
      %v246 = vld [vmem:[%s1 + $0x1b0] sm:$0xff]
      %v247 = vld [vmem:[%s1 + $0x1b8] sm:$0xff]
      %v248 = vld [vmem:[%s1 + $0x1c0] sm:$0xff]
      %v249 = vld [vmem:[%s1 + $0x1c8] sm:$0xff]
      %v250 = vld [vmem:[%s1 + $0x1d0] sm:$0xff]
      %v251 = vld [vmem:[%s1 + $0x1d8] sm:$0xff]
      %v252 = vld [vmem:[%s1 + $0x1e0] sm:$0xff]
      %v253 = vld [vmem:[%s1 + $0x1e8] sm:$0xff]
      %v254 = vld [vmem:[%s1 + $0x1f0] sm:$0xff]
      %v255 = vld [vmem:[%s1 + $0x1f8] sm:$0xff]
      %v256 = vld [vmem:[%s1 + $0x200] sm:$0xff]
      %v257 = vld [vmem:[%s1 + $0x208] sm:$0xff]
      %v258 = vld [vmem:[%s1 + $0x210] sm:$0xff]
      %v259 = vld [vmem:[%s1 + $0x218] sm:$0xff]
      %v260 = vld [vmem:[%s1 + $0x220] sm:$0xff]
      %v261 = vld [vmem:[%s1 + $0x228] sm:$0xff]
      %v262 = vld [vmem:[%s1 + $0x230] sm:$0xff]
      %v263 = vld [vmem:[%s1 + $0x238] sm:$0xff]
      %v264 = vld [vmem:[%s1 + $0x240] sm:$0xff]
      %v265 = vld [vmem:[%s1 + $0x248] sm:$0xff]
      %v266 = vld [vmem:[%s1 + $0x250] sm:$0xff]
      %v267 = vld [vmem:[%s1 + $0x258] sm:$0xff]
      %v268 = vld [vmem:[%s1 + $0x260] sm:$0xff]
      %v269 = vld [vmem:[%s1 + $0x268] sm:$0xff]
      %v270 = vld [vmem:[%s1 + $0x270] sm:$0xff]
      %v271 = vld [vmem:[%s1 + $0x278] sm:$0xff]
      %v272 = vld [vmem:[%s1 + $0x280] sm:$0xff]
      %v273 = vld [vmem:[%s1 + $0x288] sm:$0xff]
      %v274 = vld [vmem:[%s1 + $0x290] sm:$0xff]
      %v275 = vld [vmem:[%s1 + $0x298] sm:$0xff]
      %v276 = vld [vmem:[%s1 + $0x2a0] sm:$0xff]
      %v277 = vld [vmem:[%s1 + $0x2a8] sm:$0xff]
      %v278 = vld [vmem:[%s1 + $0x2b0] sm:$0xff]
      %v279 = vld [vmem:[%s1 + $0x2b8] sm:$0xff]
      %v280 = vld [vmem:[%s1 + $0x2c0] sm:$0xff]
      %v281 = vld [vmem:[%s1 + $0x2c8] sm:$0xff]
      %v282 = vld [vmem:[%s1 + $0x2d0] sm:$0xff]
      %v283 = vld [vmem:[%s1 + $0x2d8] sm:$0xff]
      %v284 = vld [vmem:[%s1 + $0x2e0] sm:$0xff]
      %v285 = vld [vmem:[%s1 + $0x2e8] sm:$0xff]
      %v286 = vld [vmem:[%s1 + $0x2f0] sm:$0xff]
      %v287 = vld [vmem:[%s1 + $0x2f8] sm:$0xff]
      %v288 = vld [vmem:[%s1 + $0x300] sm:$0xff]
      %v289 = vld [vmem:[%s1 + $0x308] sm:$0xff]
      %v290 = vld [vmem:[%s1 + $0x310] sm:$0xff]
      %v291 = vld [vmem:[%s1 + $0x318] sm:$0xff]
      %v292 = vld [vmem:[%s1 + $0x320] sm:$0xff]
      %v293 = vld [vmem:[%s1 + $0x328] sm:$0xff]
      %v294 = vld [vmem:[%s1 + $0x330] sm:$0xff]
      %v295 = vld [vmem:[%s1 + $0x338] sm:$0xff]
      %v296 = vld [vmem:[%s1 + $0x340] sm:$0xff]
      %v297 = vld [vmem:[%s1 + $0x348] sm:$0xff]
      %v298 = vld [vmem:[%s1 + $0x350] sm:$0xff]
      %v299 = vld [vmem:[%s1 + $0x358] sm:$0xff]
      %v300 = vld [vmem:[%s1 + $0x360] sm:$0xff]
      %v301 = vld [vmem:[%s1 + $0x368] sm:$0xff]
      %v302 = vld [vmem:[%s1 + $0x370] sm:$0xff]
      %v303 = vld [vmem:[%s1 + $0x378] sm:$0xff]
      %v304 = vld [vmem:[%s1 + $0x380] sm:$0xff]
      %v305 = vld [vmem:[%s1 + $0x388] sm:$0xff]
      %v306 = vld [vmem:[%s1 + $0x390] sm:$0xff]
      %v307 = vld [vmem:[%s1 + $0x398] sm:$0xff]
      %v308 = vld [vmem:[%s1 + $0x3a0] sm:$0xff]
      %v309 = vld [vmem:[%s1 + $0x3a8] sm:$0xff]
      %v310 = vld [vmem:[%s1 + $0x3b0] sm:$0xff]
      %v311 = vld [vmem:[%s1 + $0x3b8] sm:$0xff]
      %v312 = vld [vmem:[%s1 + $0x3c0] sm:$0xff]
      %v313 = vld [vmem:[%s1 + $0x3c8] sm:$0xff]
      %v314 = vld [vmem:[%s1 + $0x3d0] sm:$0xff]
      %v315 = vld [vmem:[%s1 + $0x3d8] sm:$0xff]
      %v316 = vld [vmem:[%s1 + $0x3e0] sm:$0xff]
      %v317 = vld [vmem:[%s1 + $0x3e8] sm:$0xff]
      %v318 = vld [vmem:[%s1 + $0x3f0] sm:$0xff]
      %v319 = vld [vmem:[%s1 + $0x3f8] sm:$0xff]
      %v320 = vld [vmem:[%s1 + $0x400] sm:$0xff]
      %v321 = vld [vmem:[%s1 + $0x408] sm:$0xff]
      %v322 = vld [vmem:[%s1 + $0x410] sm:$0xff]
      %v323 = vld [vmem:[%s1 + $0x418] sm:$0xff]
      %v324 = vld [vmem:[%s1 + $0x420] sm:$0xff]
      %v325 = vld [vmem:[%s1 + $0x428] sm:$0xff]
      %v326 = vld [vmem:[%s1 + $0x430] sm:$0xff]
      %v327 = vld [vmem:[%s1 + $0x438] sm:$0xff]
      %v328 = vld [vmem:[%s1 + $0x440] sm:$0xff]
      %v329 = vld [vmem:[%s1 + $0x448] sm:$0xff]
      %v330 = vld [vmem:[%s1 + $0x450] sm:$0xff]
      %v331 = vld [vmem:[%s1 + $0x458] sm:$0xff]
      %v332 = vld [vmem:[%s1 + $0x460] sm:$0xff]
      %v333 = vld [vmem:[%s1 + $0x468] sm:$0xff]
      %v334 = vld [vmem:[%s1 + $0x470] sm:$0xff]
      %v335 = vld [vmem:[%s1 + $0x478] sm:$0xff]
      %v336 = vld [vmem:[%s1 + $0x480] sm:$0xff]
      %v337 = vld [vmem:[%s1 + $0x488] sm:$0xff]
      %v338 = vld [vmem:[%s1 + $0x490] sm:$0xff]
      %v339 = vld [vmem:[%s1 + $0x498] sm:$0xff]
      %v340 = vld [vmem:[%s1 + $0x4a0] sm:$0xff]
      %v341 = vld [vmem:[%s1 + $0x4a8] sm:$0xff]
      %v342 = vld [vmem:[%s1 + $0x4b0] sm:$0xff]
      %v343 = vld [vmem:[%s1 + $0x4b8] sm:$0xff]
      %v344 = vld [vmem:[%s1 + $0x4c0] sm:$0xff]
      %v345 = vld [vmem:[%s1 + $0x4c8] sm:$0xff]
      %v346 = vld [vmem:[%s1 + $0x4d0] sm:$0xff]
      %v347 = vld [vmem:[%s1 + $0x4d8] sm:$0xff]
      %v348 = vld [vmem:[%s1 + $0x4e0] sm:$0xff]
      %v349 = vld [vmem:[%s1 + $0x4e8] sm:$0xff]
      %v350 = vld [vmem:[%s1 + $0x4f0] sm:$0xff]
      %v351 = vld [vmem:[%s1 + $0x4f8] sm:$0xff]
      %v352 = vld [vmem:[%s1 + $0x500] sm:$0xff]
      %v353 = vld [vmem:[%s1 + $0x508] sm:$0xff]
      %v354 = vld [vmem:[%s1 + $0x510] sm:$0xff]
      %v355 = vld [vmem:[%s1 + $0x518] sm:$0xff]
      %v356 = vld [vmem:[%s1 + $0x520] sm:$0xff]
      %v357 = vld [vmem:[%s1 + $0x528] sm:$0xff]
      %v358 = vld [vmem:[%s1 + $0x530] sm:$0xff]
      %v359 = vld [vmem:[%s1 + $0x538] sm:$0xff]
      %v360 = vld [vmem:[%s1 + $0x540] sm:$0xff]
      %v361 = vld [vmem:[%s1 + $0x548] sm:$0xff]
      %v362 = vld [vmem:[%s1 + $0x550] sm:$0xff]
      %v363 = vld [vmem:[%s1 + $0x558] sm:$0xff]
      %v364 = vld [vmem:[%s1 + $0x560] sm:$0xff]
      %v365 = vld [vmem:[%s1 + $0x568] sm:$0xff]
      %v366 = vld [vmem:[%s1 + $0x570] sm:$0xff]
      %v367 = vld [vmem:[%s1 + $0x578] sm:$0xff]
      %v368 = vld [vmem:[%s1 + $0x580] sm:$0xff]
      %v369 = vld [vmem:[%s1 + $0x588] sm:$0xff]
      %v370 = vld [vmem:[%s1 + $0x590] sm:$0xff]
      %v371 = vld [vmem:[%s1 + $0x598] sm:$0xff]
      %v372 = vld [vmem:[%s1 + $0x5a0] sm:$0xff]
      %v373 = vld [vmem:[%s1 + $0x5a8] sm:$0xff]
      %v374 = vld [vmem:[%s1 + $0x5b0] sm:$0xff]
      %v375 = vld [vmem:[%s1 + $0x5b8] sm:$0xff]
      %v376 = vld [vmem:[%s1 + $0x5c0] sm:$0xff]
      %v377 = vld [vmem:[%s1 + $0x5c8] sm:$0xff]
      %v378 = vld [vmem:[%s1 + $0x5d0] sm:$0xff]
      %v379 = vld [vmem:[%s1 + $0x5d8] sm:$0xff]
      %v380 = vld [vmem:[%s1 + $0x5e0] sm:$0xff]
      %v381 = vld [vmem:[%s1 + $0x5e8] sm:$0xff]
      %v382 = vld [vmem:[%s1 + $0x5f0] sm:$0xff]
      %v383 = vld [vmem:[%s1 + $0x5f8] sm:$0xff]
      %v388 = vunpack.c.l.b16 %v188
      %v389 = vunpack.c.h.b16 %v188
      %v390 = vunpack.c.l.b16 %v189
      %v391 = vunpack.c.h.b16 %v189
      %v392 = vunpack.c.l.b16 %v190
      %v393 = vunpack.c.h.b16 %v190
      %v394 = vunpack.c.l.b16 %v191
      %v395 = vunpack.c.h.b16 %v191
      %v396 = vpack.c.b16 %v392, %v388
      %v397 = vpack.c.b16 %v393, %v389
      %v398 = vpack.c.b16 %v394, %v390
      %v399 = vpack.c.b16 %v395, %v391
      %v596 = vunpack.c.l.b16 %v192
      %v597 = vunpack.c.h.b16 %v192
      %v598 = vunpack.c.l.b16 %v193
      %v599 = vunpack.c.h.b16 %v193
      %v600 = vunpack.c.l.b16 %v194
      %v601 = vunpack.c.h.b16 %v194
      %v602 = vunpack.c.l.b16 %v195
      %v603 = vunpack.c.h.b16 %v195
      %v604 = vunpack.c.l.b16 %v196
      %v605 = vunpack.c.h.b16 %v196
      %v606 = vunpack.c.l.b16 %v197
      %v607 = vunpack.c.h.b16 %v197
      %v608 = vunpack.c.l.b16 %v198
      %v609 = vunpack.c.h.b16 %v198
      %v610 = vunpack.c.l.b16 %v199
      %v611 = vunpack.c.h.b16 %v199
      %v612 = vunpack.c.l.b16 %v200
      %v613 = vunpack.c.h.b16 %v200
      %v614 = vunpack.c.l.b16 %v201
      %v615 = vunpack.c.h.b16 %v201
      %v616 = vunpack.c.l.b16 %v202
      %v617 = vunpack.c.h.b16 %v202
      %v618 = vunpack.c.l.b16 %v203
      %v619 = vunpack.c.h.b16 %v203
      %v620 = vunpack.c.l.b16 %v204
      %v621 = vunpack.c.h.b16 %v204
      %v622 = vunpack.c.l.b16 %v205
      %v623 = vunpack.c.h.b16 %v205
      %v624 = vunpack.c.l.b16 %v206
      %v625 = vunpack.c.h.b16 %v206
      %v626 = vunpack.c.l.b16 %v207
      %v627 = vunpack.c.h.b16 %v207
      %v628 = vunpack.c.l.b16 %v208
      %v629 = vunpack.c.h.b16 %v208
      %v630 = vunpack.c.l.b16 %v209
      %v631 = vunpack.c.h.b16 %v209
      %v632 = vunpack.c.l.b16 %v210
      %v633 = vunpack.c.h.b16 %v210
      %v634 = vunpack.c.l.b16 %v211
      %v635 = vunpack.c.h.b16 %v211
      %v636 = vunpack.c.l.b16 %v212
      %v637 = vunpack.c.h.b16 %v212
      %v638 = vunpack.c.l.b16 %v213
      %v639 = vunpack.c.h.b16 %v213
      %v640 = vunpack.c.l.b16 %v214
      %v641 = vunpack.c.h.b16 %v214
      %v642 = vunpack.c.l.b16 %v215
      %v643 = vunpack.c.h.b16 %v215
      %v644 = vunpack.c.l.b16 %v216
      %v645 = vunpack.c.h.b16 %v216
      %v646 = vunpack.c.l.b16 %v217
      %v647 = vunpack.c.h.b16 %v217
      %v648 = vunpack.c.l.b16 %v218
      %v649 = vunpack.c.h.b16 %v218
      %v650 = vunpack.c.l.b16 %v219
      %v651 = vunpack.c.h.b16 %v219
      %v652 = vunpack.c.l.b16 %v220
      %v653 = vunpack.c.h.b16 %v220
      %v654 = vunpack.c.l.b16 %v221
      %v655 = vunpack.c.h.b16 %v221
      %v656 = vunpack.c.l.b16 %v222
      %v657 = vunpack.c.h.b16 %v222
      %v658 = vunpack.c.l.b16 %v223
      %v659 = vunpack.c.h.b16 %v223
      %v660 = vunpack.c.l.b16 %v224
      %v661 = vunpack.c.h.b16 %v224
      %v662 = vunpack.c.l.b16 %v225
      %v663 = vunpack.c.h.b16 %v225
      %v664 = vunpack.c.l.b16 %v226
      %v665 = vunpack.c.h.b16 %v226
      %v666 = vunpack.c.l.b16 %v227
      %v667 = vunpack.c.h.b16 %v227
      %v668 = vunpack.c.l.b16 %v228
      %v669 = vunpack.c.h.b16 %v228
      %v670 = vunpack.c.l.b16 %v229
      %v671 = vunpack.c.h.b16 %v229
      %v672 = vunpack.c.l.b16 %v230
      %v673 = vunpack.c.h.b16 %v230
      %v674 = vunpack.c.l.b16 %v231
      %v675 = vunpack.c.h.b16 %v231
      %v676 = vunpack.c.l.b16 %v232
      %v677 = vunpack.c.h.b16 %v232
      %v678 = vunpack.c.l.b16 %v233
      %v679 = vunpack.c.h.b16 %v233
      %v680 = vunpack.c.l.b16 %v234
      %v681 = vunpack.c.h.b16 %v234
      %v682 = vunpack.c.l.b16 %v235
      %v683 = vunpack.c.h.b16 %v235
      %v684 = vunpack.c.l.b16 %v236
      %v685 = vunpack.c.h.b16 %v236
      %v686 = vunpack.c.l.b16 %v237
      %v687 = vunpack.c.h.b16 %v237
      %v688 = vunpack.c.l.b16 %v238
      %v689 = vunpack.c.h.b16 %v238
      %v690 = vunpack.c.l.b16 %v239
      %v691 = vunpack.c.h.b16 %v239
      %v692 = vunpack.c.l.b16 %v240
      %v693 = vunpack.c.h.b16 %v240
      %v694 = vunpack.c.l.b16 %v241
      %v695 = vunpack.c.h.b16 %v241
      %v696 = vunpack.c.l.b16 %v242
      %v697 = vunpack.c.h.b16 %v242
      %v698 = vunpack.c.l.b16 %v243
      %v699 = vunpack.c.h.b16 %v243
      %v700 = vunpack.c.l.b16 %v244
      %v701 = vunpack.c.h.b16 %v244
      %v702 = vunpack.c.l.b16 %v245
      %v703 = vunpack.c.h.b16 %v245
      %v704 = vunpack.c.l.b16 %v246
      %v705 = vunpack.c.h.b16 %v246
      %v706 = vunpack.c.l.b16 %v247
      %v707 = vunpack.c.h.b16 %v247
      %v708 = vunpack.c.l.b16 %v248
      %v709 = vunpack.c.h.b16 %v248
      %v710 = vunpack.c.l.b16 %v249
      %v711 = vunpack.c.h.b16 %v249
      %v712 = vunpack.c.l.b16 %v250
      %v713 = vunpack.c.h.b16 %v250
      %v714 = vunpack.c.l.b16 %v251
      %v715 = vunpack.c.h.b16 %v251
      %v716 = vunpack.c.l.b16 %v252
      %v717 = vunpack.c.h.b16 %v252
      %v718 = vunpack.c.l.b16 %v253
      %v719 = vunpack.c.h.b16 %v253
      %v720 = vunpack.c.l.b16 %v254
      %v721 = vunpack.c.h.b16 %v254
      %v722 = vunpack.c.l.b16 %v255
      %v723 = vunpack.c.h.b16 %v255
      %v724 = vunpack.c.l.b16 %v256
      %v725 = vunpack.c.h.b16 %v256
      %v726 = vunpack.c.l.b16 %v257
      %v727 = vunpack.c.h.b16 %v257
      %v728 = vunpack.c.l.b16 %v258
      %v729 = vunpack.c.h.b16 %v258
      %v730 = vunpack.c.l.b16 %v259
      %v731 = vunpack.c.h.b16 %v259
      %v732 = vunpack.c.l.b16 %v260
      %v733 = vunpack.c.h.b16 %v260
      %v734 = vunpack.c.l.b16 %v261
      %v735 = vunpack.c.h.b16 %v261
      %v736 = vunpack.c.l.b16 %v262
      %v737 = vunpack.c.h.b16 %v262
      %v738 = vunpack.c.l.b16 %v263
      %v739 = vunpack.c.h.b16 %v263
      %v740 = vunpack.c.l.b16 %v264
      %v741 = vunpack.c.h.b16 %v264
      %v742 = vunpack.c.l.b16 %v265
      %v743 = vunpack.c.h.b16 %v265
      %v744 = vunpack.c.l.b16 %v266
      %v745 = vunpack.c.h.b16 %v266
      %v746 = vunpack.c.l.b16 %v267
      %v747 = vunpack.c.h.b16 %v267
      %v748 = vunpack.c.l.b16 %v268
      %v749 = vunpack.c.h.b16 %v268
      %v750 = vunpack.c.l.b16 %v269
      %v751 = vunpack.c.h.b16 %v269
      %v752 = vunpack.c.l.b16 %v270
      %v753 = vunpack.c.h.b16 %v270
      %v754 = vunpack.c.l.b16 %v271
      %v755 = vunpack.c.h.b16 %v271
      %v756 = vunpack.c.l.b16 %v272
      %v757 = vunpack.c.h.b16 %v272
      %v758 = vunpack.c.l.b16 %v273
      %v759 = vunpack.c.h.b16 %v273
      %v760 = vunpack.c.l.b16 %v274
      %v761 = vunpack.c.h.b16 %v274
      %v762 = vunpack.c.l.b16 %v275
      %v763 = vunpack.c.h.b16 %v275
      %v764 = vunpack.c.l.b16 %v276
      %v765 = vunpack.c.h.b16 %v276
      %v766 = vunpack.c.l.b16 %v277
      %v767 = vunpack.c.h.b16 %v277
      %v768 = vunpack.c.l.b16 %v278
      %v769 = vunpack.c.h.b16 %v278
      %v770 = vunpack.c.l.b16 %v279
      %v771 = vunpack.c.h.b16 %v279
      %v772 = vunpack.c.l.b16 %v280
      %v773 = vunpack.c.h.b16 %v280
      %v774 = vunpack.c.l.b16 %v281
      %v775 = vunpack.c.h.b16 %v281
      %v776 = vunpack.c.l.b16 %v282
      %v777 = vunpack.c.h.b16 %v282
      %v778 = vunpack.c.l.b16 %v283
      %v779 = vunpack.c.h.b16 %v283
      %v780 = vunpack.c.l.b16 %v284
      %v781 = vunpack.c.h.b16 %v284
      %v782 = vunpack.c.l.b16 %v285
      %v783 = vunpack.c.h.b16 %v285
      %v784 = vunpack.c.l.b16 %v286
      %v785 = vunpack.c.h.b16 %v286
      %v786 = vunpack.c.l.b16 %v287
      %v787 = vunpack.c.h.b16 %v287
      %v788 = vunpack.c.l.b16 %v288
      %v789 = vunpack.c.h.b16 %v288
      %v790 = vunpack.c.l.b16 %v289
      %v791 = vunpack.c.h.b16 %v289
      %v792 = vunpack.c.l.b16 %v290
      %v793 = vunpack.c.h.b16 %v290
      %v794 = vunpack.c.l.b16 %v291
      %v795 = vunpack.c.h.b16 %v291
      %v796 = vunpack.c.l.b16 %v292
      %v797 = vunpack.c.h.b16 %v292
      %v798 = vunpack.c.l.b16 %v293
      %v799 = vunpack.c.h.b16 %v293
      %v800 = vunpack.c.l.b16 %v294
      %v801 = vunpack.c.h.b16 %v294
      %v802 = vunpack.c.l.b16 %v295
      %v803 = vunpack.c.h.b16 %v295
      %v804 = vunpack.c.l.b16 %v296
      %v805 = vunpack.c.h.b16 %v296
      %v806 = vunpack.c.l.b16 %v297
      %v807 = vunpack.c.h.b16 %v297
      %v808 = vunpack.c.l.b16 %v298
      %v809 = vunpack.c.h.b16 %v298
      %v810 = vunpack.c.l.b16 %v299
      %v811 = vunpack.c.h.b16 %v299
      %v812 = vunpack.c.l.b16 %v300
      %v813 = vunpack.c.h.b16 %v300
      %v814 = vunpack.c.l.b16 %v301
      %v815 = vunpack.c.h.b16 %v301
      %v816 = vunpack.c.l.b16 %v302
      %v817 = vunpack.c.h.b16 %v302
      %v818 = vunpack.c.l.b16 %v303
      %v819 = vunpack.c.h.b16 %v303
      %v820 = vunpack.c.l.b16 %v304
      %v821 = vunpack.c.h.b16 %v304
      %v822 = vunpack.c.l.b16 %v305
      %v823 = vunpack.c.h.b16 %v305
      %v824 = vunpack.c.l.b16 %v306
      %v825 = vunpack.c.h.b16 %v306
      %v826 = vunpack.c.l.b16 %v307
      %v827 = vunpack.c.h.b16 %v307
      %v828 = vunpack.c.l.b16 %v308
      %v829 = vunpack.c.h.b16 %v308
      %v830 = vunpack.c.l.b16 %v309
      %v831 = vunpack.c.h.b16 %v309
      %v832 = vunpack.c.l.b16 %v310
      %v833 = vunpack.c.h.b16 %v310
      %v834 = vunpack.c.l.b16 %v311
      %v835 = vunpack.c.h.b16 %v311
      %v836 = vunpack.c.l.b16 %v312
      %v837 = vunpack.c.h.b16 %v312
      %v838 = vunpack.c.l.b16 %v313
      %v839 = vunpack.c.h.b16 %v313
      %v840 = vunpack.c.l.b16 %v314
      %v841 = vunpack.c.h.b16 %v314
      %v842 = vunpack.c.l.b16 %v315
      %v843 = vunpack.c.h.b16 %v315
      %v844 = vunpack.c.l.b16 %v316
      %v845 = vunpack.c.h.b16 %v316
      %v846 = vunpack.c.l.b16 %v317
      %v847 = vunpack.c.h.b16 %v317
      %v848 = vunpack.c.l.b16 %v318
      %v849 = vunpack.c.h.b16 %v318
      %v850 = vunpack.c.l.b16 %v319
      %v851 = vunpack.c.h.b16 %v319
      %v852 = vunpack.c.l.b16 %v320
      %v853 = vunpack.c.h.b16 %v320
      %v854 = vunpack.c.l.b16 %v321
      %v855 = vunpack.c.h.b16 %v321
      %v856 = vunpack.c.l.b16 %v322
      %v857 = vunpack.c.h.b16 %v322
      %v858 = vunpack.c.l.b16 %v323
      %v859 = vunpack.c.h.b16 %v323
      %v860 = vunpack.c.l.b16 %v324
      %v861 = vunpack.c.h.b16 %v324
      %v862 = vunpack.c.l.b16 %v325
      %v863 = vunpack.c.h.b16 %v325
      %v864 = vunpack.c.l.b16 %v326
      %v865 = vunpack.c.h.b16 %v326
      %v866 = vunpack.c.l.b16 %v327
      %v867 = vunpack.c.h.b16 %v327
      %v868 = vunpack.c.l.b16 %v328
      %v869 = vunpack.c.h.b16 %v328
      %v870 = vunpack.c.l.b16 %v329
      %v871 = vunpack.c.h.b16 %v329
      %v872 = vunpack.c.l.b16 %v330
      %v873 = vunpack.c.h.b16 %v330
      %v874 = vunpack.c.l.b16 %v331
      %v875 = vunpack.c.h.b16 %v331
      %v876 = vunpack.c.l.b16 %v332
      %v877 = vunpack.c.h.b16 %v332
      %v878 = vunpack.c.l.b16 %v333
      %v879 = vunpack.c.h.b16 %v333
      %v880 = vunpack.c.l.b16 %v334
      %v881 = vunpack.c.h.b16 %v334
      %v882 = vunpack.c.l.b16 %v335
      %v883 = vunpack.c.h.b16 %v335
      %v884 = vunpack.c.l.b16 %v336
      %v885 = vunpack.c.h.b16 %v336
      %v886 = vunpack.c.l.b16 %v337
      %v887 = vunpack.c.h.b16 %v337
      %v888 = vunpack.c.l.b16 %v338
      %v889 = vunpack.c.h.b16 %v338
      %v890 = vunpack.c.l.b16 %v339
      %v891 = vunpack.c.h.b16 %v339
      %v892 = vunpack.c.l.b16 %v340
      %v893 = vunpack.c.h.b16 %v340
      %v894 = vunpack.c.l.b16 %v341
      %v895 = vunpack.c.h.b16 %v341
      %v896 = vunpack.c.l.b16 %v342
      %v897 = vunpack.c.h.b16 %v342
      %v898 = vunpack.c.l.b16 %v343
      %v899 = vunpack.c.h.b16 %v343
      %v900 = vunpack.c.l.b16 %v344
      %v901 = vunpack.c.h.b16 %v344
      %v902 = vunpack.c.l.b16 %v345
      %v903 = vunpack.c.h.b16 %v345
      %v904 = vunpack.c.l.b16 %v346
      %v905 = vunpack.c.h.b16 %v346
      %v906 = vunpack.c.l.b16 %v347
      %v907 = vunpack.c.h.b16 %v347
      %v908 = vunpack.c.l.b16 %v348
      %v909 = vunpack.c.h.b16 %v348
      %v910 = vunpack.c.l.b16 %v349
      %v911 = vunpack.c.h.b16 %v349
      %v912 = vunpack.c.l.b16 %v350
      %v913 = vunpack.c.h.b16 %v350
      %v914 = vunpack.c.l.b16 %v351
      %v915 = vunpack.c.h.b16 %v351
      %v916 = vunpack.c.l.b16 %v352
      %v917 = vunpack.c.h.b16 %v352
      %v918 = vunpack.c.l.b16 %v353
      %v919 = vunpack.c.h.b16 %v353
      %v920 = vunpack.c.l.b16 %v354
      %v921 = vunpack.c.h.b16 %v354
      %v922 = vunpack.c.l.b16 %v355
      %v923 = vunpack.c.h.b16 %v355
      %v924 = vunpack.c.l.b16 %v356
      %v925 = vunpack.c.h.b16 %v356
      %v926 = vunpack.c.l.b16 %v357
      %v927 = vunpack.c.h.b16 %v357
      %v928 = vunpack.c.l.b16 %v358
      %v929 = vunpack.c.h.b16 %v358
      %v930 = vunpack.c.l.b16 %v359
      %v931 = vunpack.c.h.b16 %v359
      %v932 = vunpack.c.l.b16 %v360
      %v933 = vunpack.c.h.b16 %v360
      %v934 = vunpack.c.l.b16 %v361
      %v935 = vunpack.c.h.b16 %v361
      %v936 = vunpack.c.l.b16 %v362
      %v937 = vunpack.c.h.b16 %v362
      %v938 = vunpack.c.l.b16 %v363
      %v939 = vunpack.c.h.b16 %v363
      %v940 = vunpack.c.l.b16 %v364
      %v941 = vunpack.c.h.b16 %v364
      %v942 = vunpack.c.l.b16 %v365
      %v943 = vunpack.c.h.b16 %v365
      %v944 = vunpack.c.l.b16 %v366
      %v945 = vunpack.c.h.b16 %v366
      %v946 = vunpack.c.l.b16 %v367
      %v947 = vunpack.c.h.b16 %v367
      %v948 = vunpack.c.l.b16 %v368
      %v949 = vunpack.c.h.b16 %v368
      %v950 = vunpack.c.l.b16 %v369
      %v951 = vunpack.c.h.b16 %v369
      %v952 = vunpack.c.l.b16 %v370
      %v953 = vunpack.c.h.b16 %v370
      %v954 = vunpack.c.l.b16 %v371
      %v955 = vunpack.c.h.b16 %v371
      %v956 = vunpack.c.l.b16 %v372
      %v957 = vunpack.c.h.b16 %v372
      %v958 = vunpack.c.l.b16 %v373
      %v959 = vunpack.c.h.b16 %v373
      %v960 = vunpack.c.l.b16 %v374
      %v961 = vunpack.c.h.b16 %v374
      %v962 = vunpack.c.l.b16 %v375
      %v963 = vunpack.c.h.b16 %v375
      %v964 = vunpack.c.l.b16 %v376
      %v965 = vunpack.c.h.b16 %v376
      %v966 = vunpack.c.l.b16 %v377
      %v967 = vunpack.c.h.b16 %v377
      %v968 = vunpack.c.l.b16 %v378
      %v969 = vunpack.c.h.b16 %v378
      %v970 = vunpack.c.l.b16 %v379
      %v971 = vunpack.c.h.b16 %v379
      %v972 = vunpack.c.l.b16 %v380
      %v973 = vunpack.c.h.b16 %v380
      %v974 = vunpack.c.l.b16 %v381
      %v975 = vunpack.c.h.b16 %v381
      %v976 = vunpack.c.l.b16 %v382
      %v977 = vunpack.c.h.b16 %v382
      %v978 = vunpack.c.l.b16 %v383
      %v979 = vunpack.c.h.b16 %v383
      %v980 = vpack.c.b16 %v602, %v596
      %v981 = vpack.c.b16 %v603, %v597
      %v982 = vpack.c.b16 %v604, %v598
      %v983 = vpack.c.b16 %v605, %v599
      %v984 = vpack.c.b16 %v606, %v600
      %v985 = vpack.c.b16 %v607, %v601
      %v986 = vpack.c.b16 %v614, %v608
      %v987 = vpack.c.b16 %v615, %v609
      %v988 = vpack.c.b16 %v616, %v610
      %v989 = vpack.c.b16 %v617, %v611
      %v990 = vpack.c.b16 %v618, %v612
      %v991 = vpack.c.b16 %v619, %v613
      %v992 = vpack.c.b16 %v626, %v620
      %v993 = vpack.c.b16 %v627, %v621
      %v994 = vpack.c.b16 %v628, %v622
      %v995 = vpack.c.b16 %v629, %v623
      %v996 = vpack.c.b16 %v630, %v624
      %v997 = vpack.c.b16 %v631, %v625
      %v998 = vpack.c.b16 %v638, %v632
      %v999 = vpack.c.b16 %v639, %v633
      %v1000 = vpack.c.b16 %v640, %v634
      %v1001 = vpack.c.b16 %v641, %v635
      %v1002 = vpack.c.b16 %v642, %v636
      %v1003 = vpack.c.b16 %v643, %v637
      %v1004 = vpack.c.b16 %v650, %v644
      %v1005 = vpack.c.b16 %v651, %v645
      %v1006 = vpack.c.b16 %v652, %v646
      %v1007 = vpack.c.b16 %v653, %v647
      %v1008 = vpack.c.b16 %v654, %v648
      %v1009 = vpack.c.b16 %v655, %v649
      %v1010 = vpack.c.b16 %v662, %v656
      %v1011 = vpack.c.b16 %v663, %v657
      %v1012 = vpack.c.b16 %v664, %v658
      %v1013 = vpack.c.b16 %v665, %v659
      %v1014 = vpack.c.b16 %v666, %v660
      %v1015 = vpack.c.b16 %v667, %v661
      %v1016 = vpack.c.b16 %v674, %v668
      %v1017 = vpack.c.b16 %v675, %v669
      %v1018 = vpack.c.b16 %v676, %v670
      %v1019 = vpack.c.b16 %v677, %v671
      %v1020 = vpack.c.b16 %v678, %v672
      %v1021 = vpack.c.b16 %v679, %v673
      %v1022 = vpack.c.b16 %v686, %v680
      %v1023 = vpack.c.b16 %v687, %v681
      %v1024 = vpack.c.b16 %v688, %v682
      %v1025 = vpack.c.b16 %v689, %v683
      %v1026 = vpack.c.b16 %v690, %v684
      %v1027 = vpack.c.b16 %v691, %v685
      %v1028 = vpack.c.b16 %v698, %v692
      %v1029 = vpack.c.b16 %v699, %v693
      %v1030 = vpack.c.b16 %v700, %v694
      %v1031 = vpack.c.b16 %v701, %v695
      %v1032 = vpack.c.b16 %v702, %v696
      %v1033 = vpack.c.b16 %v703, %v697
      %v1034 = vpack.c.b16 %v710, %v704
      %v1035 = vpack.c.b16 %v711, %v705
      %v1036 = vpack.c.b16 %v712, %v706
      %v1037 = vpack.c.b16 %v713, %v707
      %v1038 = vpack.c.b16 %v714, %v708
      %v1039 = vpack.c.b16 %v715, %v709
      %v1040 = vpack.c.b16 %v722, %v716
      %v1041 = vpack.c.b16 %v723, %v717
      %v1042 = vpack.c.b16 %v724, %v718
      %v1043 = vpack.c.b16 %v725, %v719
      %v1044 = vpack.c.b16 %v726, %v720
      %v1045 = vpack.c.b16 %v727, %v721
      %v1046 = vpack.c.b16 %v734, %v728
      %v1047 = vpack.c.b16 %v735, %v729
      %v1048 = vpack.c.b16 %v736, %v730
      %v1049 = vpack.c.b16 %v737, %v731
      %v1050 = vpack.c.b16 %v738, %v732
      %v1051 = vpack.c.b16 %v739, %v733
      %v1052 = vpack.c.b16 %v746, %v740
      %v1053 = vpack.c.b16 %v747, %v741
      %v1054 = vpack.c.b16 %v748, %v742
      %v1055 = vpack.c.b16 %v749, %v743
      %v1056 = vpack.c.b16 %v750, %v744
      %v1057 = vpack.c.b16 %v751, %v745
      %v1058 = vpack.c.b16 %v758, %v752
      %v1059 = vpack.c.b16 %v759, %v753
      %v1060 = vpack.c.b16 %v760, %v754
      %v1061 = vpack.c.b16 %v761, %v755
      %v1062 = vpack.c.b16 %v762, %v756
      %v1063 = vpack.c.b16 %v763, %v757
      %v1064 = vpack.c.b16 %v770, %v764
      %v1065 = vpack.c.b16 %v771, %v765
      %v1066 = vpack.c.b16 %v772, %v766
      %v1067 = vpack.c.b16 %v773, %v767
      %v1068 = vpack.c.b16 %v774, %v768
      %v1069 = vpack.c.b16 %v775, %v769
      %v1070 = vpack.c.b16 %v782, %v776
      %v1071 = vpack.c.b16 %v783, %v777
      %v1072 = vpack.c.b16 %v784, %v778
      %v1073 = vpack.c.b16 %v785, %v779
      %v1074 = vpack.c.b16 %v786, %v780
      %v1075 = vpack.c.b16 %v787, %v781
      %v1076 = vpack.c.b16 %v794, %v788
      %v1077 = vpack.c.b16 %v795, %v789
      %v1078 = vpack.c.b16 %v796, %v790
      %v1079 = vpack.c.b16 %v797, %v791
      %v1080 = vpack.c.b16 %v798, %v792
      %v1081 = vpack.c.b16 %v799, %v793
      %v1082 = vpack.c.b16 %v806, %v800
      %v1083 = vpack.c.b16 %v807, %v801
      %v1084 = vpack.c.b16 %v808, %v802
      %v1085 = vpack.c.b16 %v809, %v803
      %v1086 = vpack.c.b16 %v810, %v804
      %v1087 = vpack.c.b16 %v811, %v805
      %v1088 = vpack.c.b16 %v818, %v812
      %v1089 = vpack.c.b16 %v819, %v813
      %v1090 = vpack.c.b16 %v820, %v814
      %v1091 = vpack.c.b16 %v821, %v815
      %v1092 = vpack.c.b16 %v822, %v816
      %v1093 = vpack.c.b16 %v823, %v817
      %v1094 = vpack.c.b16 %v830, %v824
      %v1095 = vpack.c.b16 %v831, %v825
      %v1096 = vpack.c.b16 %v832, %v826
      %v1097 = vpack.c.b16 %v833, %v827
      %v1098 = vpack.c.b16 %v834, %v828
      %v1099 = vpack.c.b16 %v835, %v829
      %v1100 = vpack.c.b16 %v842, %v836
      %v1101 = vpack.c.b16 %v843, %v837
      %v1102 = vpack.c.b16 %v844, %v838
      %v1103 = vpack.c.b16 %v845, %v839
      %v1104 = vpack.c.b16 %v846, %v840
      %v1105 = vpack.c.b16 %v847, %v841
      %v1106 = vpack.c.b16 %v854, %v848
      %v1107 = vpack.c.b16 %v855, %v849
      %v1108 = vpack.c.b16 %v856, %v850
      %v1109 = vpack.c.b16 %v857, %v851
      %v1110 = vpack.c.b16 %v858, %v852
      %v1111 = vpack.c.b16 %v859, %v853
      %v1112 = vpack.c.b16 %v866, %v860
      %v1113 = vpack.c.b16 %v867, %v861
      %v1114 = vpack.c.b16 %v868, %v862
      %v1115 = vpack.c.b16 %v869, %v863
      %v1116 = vpack.c.b16 %v870, %v864
      %v1117 = vpack.c.b16 %v871, %v865
      %v1118 = vpack.c.b16 %v878, %v872
      %v1119 = vpack.c.b16 %v879, %v873
      %v1120 = vpack.c.b16 %v880, %v874
      %v1121 = vpack.c.b16 %v881, %v875
      %v1122 = vpack.c.b16 %v882, %v876
      %v1123 = vpack.c.b16 %v883, %v877
      %v1124 = vpack.c.b16 %v890, %v884
      %v1125 = vpack.c.b16 %v891, %v885
      %v1126 = vpack.c.b16 %v892, %v886
      %v1127 = vpack.c.b16 %v893, %v887
      %v1128 = vpack.c.b16 %v894, %v888
      %v1129 = vpack.c.b16 %v895, %v889
      %v1130 = vpack.c.b16 %v902, %v896
      %v1131 = vpack.c.b16 %v903, %v897
      %v1132 = vpack.c.b16 %v904, %v898
      %v1133 = vpack.c.b16 %v905, %v899
      %v1134 = vpack.c.b16 %v906, %v900
      %v1135 = vpack.c.b16 %v907, %v901
      %v1136 = vpack.c.b16 %v914, %v908
      %v1137 = vpack.c.b16 %v915, %v909
      %v1138 = vpack.c.b16 %v916, %v910
      %v1139 = vpack.c.b16 %v917, %v911
      %v1140 = vpack.c.b16 %v918, %v912
      %v1141 = vpack.c.b16 %v919, %v913
      %v1142 = vpack.c.b16 %v926, %v920
      %v1143 = vpack.c.b16 %v927, %v921
      %v1144 = vpack.c.b16 %v928, %v922
      %v1145 = vpack.c.b16 %v929, %v923
      %v1146 = vpack.c.b16 %v930, %v924
      %v1147 = vpack.c.b16 %v931, %v925
      %v1148 = vpack.c.b16 %v938, %v932
      %v1149 = vpack.c.b16 %v939, %v933
      %v1150 = vpack.c.b16 %v940, %v934
      %v1151 = vpack.c.b16 %v941, %v935
      %v1152 = vpack.c.b16 %v942, %v936
      %v1153 = vpack.c.b16 %v943, %v937
      %v1154 = vpack.c.b16 %v950, %v944
      %v1155 = vpack.c.b16 %v951, %v945
      %v1156 = vpack.c.b16 %v952, %v946
      %v1157 = vpack.c.b16 %v953, %v947
      %v1158 = vpack.c.b16 %v954, %v948
      %v1159 = vpack.c.b16 %v955, %v949
      %v1160 = vpack.c.b16 %v962, %v956
      %v1161 = vpack.c.b16 %v963, %v957
      %v1162 = vpack.c.b16 %v964, %v958
      %v1163 = vpack.c.b16 %v965, %v959
      %v1164 = vpack.c.b16 %v966, %v960
      %v1165 = vpack.c.b16 %v967, %v961
      %v1166 = vpack.c.b16 %v974, %v968
      %v1167 = vpack.c.b16 %v975, %v969
      %v1168 = vpack.c.b16 %v976, %v970
      %v1169 = vpack.c.b16 %v977, %v971
      %v1170 = vpack.c.b16 %v978, %v972
      %v1171 = vpack.c.b16 %v979, %v973
      %1364 = vmatprep.subr.bf16.mxu0 %v981
      %1365 = vmatpush1.bf16.msra.mxu0 %v980
      %1366 = vmatprep.subr.bf16.mxu0 %v987
      %1367 = vmatpush1.bf16.msra.mxu0 %v986
      %1368 = vmatprep.subr.bf16.mxu0 %v993
      %1369 = vmatpush1.bf16.msra.mxu0 %v992
      %1370 = vmatprep.subr.bf16.mxu0 %v999
      %1371 = vmatpush1.bf16.msra.mxu0 %v998
      %1372 = vmatprep.subr.bf16.mxu0 %v1005
      %1373 = vmatpush1.bf16.msra.mxu0 %v1004
      %1374 = vmatprep.subr.bf16.mxu0 %v1011
      %1375 = vmatpush1.bf16.msra.mxu0 %v1010
      %1376 = vmatprep.subr.bf16.mxu0 %v1017
      %1377 = vmatpush1.bf16.msra.mxu0 %v1016
      %1378 = vmatprep.subr.bf16.mxu0 %v1023
      %1379 = vmatpush1.bf16.msra.mxu0 %v1022
      %1380 = vmatprep.subr.bf16.mxu0 %v1029
      %1381 = vmatpush1.bf16.msra.mxu0 %v1028
      %1382 = vmatprep.subr.bf16.mxu0 %v1035
      %1383 = vmatpush1.bf16.msra.mxu0 %v1034
      %1384 = vmatprep.subr.bf16.mxu0 %v1041
      %1385 = vmatpush1.bf16.msra.mxu0 %v1040
      %1386 = vmatprep.subr.bf16.mxu0 %v1047
      %1387 = vmatpush1.bf16.msra.mxu0 %v1046
      %1388 = vmatprep.subr.bf16.mxu0 %v1053
      %1389 = vmatpush1.bf16.msra.mxu0 %v1052
      %1390 = vmatprep.subr.bf16.mxu0 %v1059
      %1391 = vmatpush1.bf16.msra.mxu0 %v1058
      %1392 = vmatprep.subr.bf16.mxu0 %v1065
      %1393 = vmatpush1.bf16.msra.mxu0 %v1064
      %1394 = vmatprep.subr.bf16.mxu0 %v1071
      %1395 = vmatpush1.bf16.msra.mxu0 %v1070
      %1396 = vmatprep.mubr.bf16.mxu0 %v397
      %1397 = vmatmul.mubr.bf16.gmra.mrb[0].mxu0 %v396
      %v1398 = vpop.f32.mrb[0].mxu0
      %v1399 = vadd.f32 0.0, %v1398
      %v1400 = vpop.f32.mrb[0].mxu0
      %v1401 = vadd.f32 0.0, %v1400
      %v1402 = vpop.f32.mrb[0].mxu0
      %v1403 = vadd.f32 0.0, %v1402
      %v1404 = vpop.f32.mrb[0].mxu0
      %v1405 = vadd.f32 0.0, %v1404
      %1406 = vdwg.mxu0
      %1407 = vmatprep.subr.bf16.mxu0 %v1077
      %1408 = vmatpush1.bf16.msra.mxu0 %v1076
      %1409 = vmatprep.subr.bf16.mxu0 %v1083
      %1410 = vmatpush1.bf16.msra.mxu0 %v1082
      %1411 = vmatprep.subr.bf16.mxu0 %v1089
      %1412 = vmatpush1.bf16.msra.mxu0 %v1088
      %1413 = vmatprep.subr.bf16.mxu0 %v1095
      %1414 = vmatpush1.bf16.msra.mxu0 %v1094
      %1415 = vmatprep.subr.bf16.mxu0 %v1101
      %1416 = vmatpush1.bf16.msra.mxu0 %v1100
      %1417 = vmatprep.subr.bf16.mxu0 %v1107
      %1418 = vmatpush1.bf16.msra.mxu0 %v1106
      %1419 = vmatprep.subr.bf16.mxu0 %v1113
      %1420 = vmatpush1.bf16.msra.mxu0 %v1112
      %1421 = vmatprep.subr.bf16.mxu0 %v1119
      %1422 = vmatpush1.bf16.msra.mxu0 %v1118
      %1423 = vmatprep.subr.bf16.mxu0 %v1125
      %1424 = vmatpush1.bf16.msra.mxu0 %v1124
      %1425 = vmatprep.subr.bf16.mxu0 %v1131
      %1426 = vmatpush1.bf16.msra.mxu0 %v1130
      %1427 = vmatprep.subr.bf16.mxu0 %v1137
      %1428 = vmatpush1.bf16.msra.mxu0 %v1136
      %1429 = vmatprep.subr.bf16.mxu0 %v1143
      %1430 = vmatpush1.bf16.msra.mxu0 %v1142
      %1431 = vmatprep.subr.bf16.mxu0 %v1149
      %1432 = vmatpush1.bf16.msra.mxu0 %v1148
      %1433 = vmatprep.subr.bf16.mxu0 %v1155
      %1434 = vmatpush1.bf16.msra.mxu0 %v1154
      %1435 = vmatprep.subr.bf16.mxu0 %v1161
      %1436 = vmatpush1.bf16.msra.mxu0 %v1160
      %1437 = vmatprep.subr.bf16.mxu0 %v1167
      %1438 = vmatpush1.bf16.msra.mxu0 %v1166
      %1439 = vmatprep.mubr.bf16.mxu0 %v399
      %1440 = vmatmul.mubr.bf16.gmra.mrb[0].mxu0 %v398
      %v1441 = vpop.f32.mrb[0].mxu0
      %v1442 = vadd.f32 %v1399, %v1441
      %v1443 = vpop.f32.mrb[0].mxu0
      %v1444 = vadd.f32 %v1401, %v1443
      %v1445 = vpop.f32.mrb[0].mxu0
      %v1446 = vadd.f32 %v1403, %v1445
      %v1447 = vpop.f32.mrb[0].mxu0
      %v1448 = vadd.f32 %v1405, %v1447
      %1449 = vdwg.mxu0
      %1450 = vmatprep.subr.bf16.mxu0 %v983
      %1451 = vmatpush1.bf16.msra.mxu0 %v982
      %1452 = vmatprep.subr.bf16.mxu0 %v989
      %1453 = vmatpush1.bf16.msra.mxu0 %v988
      %1454 = vmatprep.subr.bf16.mxu0 %v995
      %1455 = vmatpush1.bf16.msra.mxu0 %v994
      %1456 = vmatprep.subr.bf16.mxu0 %v1001
      %1457 = vmatpush1.bf16.msra.mxu0 %v1000
      %1458 = vmatprep.subr.bf16.mxu0 %v1007
      %1459 = vmatpush1.bf16.msra.mxu0 %v1006
      %1460 = vmatprep.subr.bf16.mxu0 %v1013
      %1461 = vmatpush1.bf16.msra.mxu0 %v1012
      %1462 = vmatprep.subr.bf16.mxu0 %v1019
      %1463 = vmatpush1.bf16.msra.mxu0 %v1018
      %1464 = vmatprep.subr.bf16.mxu0 %v1025
      %1465 = vmatpush1.bf16.msra.mxu0 %v1024
      %1466 = vmatprep.subr.bf16.mxu0 %v1031
      %1467 = vmatpush1.bf16.msra.mxu0 %v1030
      %1468 = vmatprep.subr.bf16.mxu0 %v1037
      %1469 = vmatpush1.bf16.msra.mxu0 %v1036
      %1470 = vmatprep.subr.bf16.mxu0 %v1043
      %1471 = vmatpush1.bf16.msra.mxu0 %v1042
      %1472 = vmatprep.subr.bf16.mxu0 %v1049
      %1473 = vmatpush1.bf16.msra.mxu0 %v1048
      %1474 = vmatprep.subr.bf16.mxu0 %v1055
      %1475 = vmatpush1.bf16.msra.mxu0 %v1054
      %1476 = vmatprep.subr.bf16.mxu0 %v1061
      %1477 = vmatpush1.bf16.msra.mxu0 %v1060
      %1478 = vmatprep.subr.bf16.mxu0 %v1067
      %1479 = vmatpush1.bf16.msra.mxu0 %v1066
      %1480 = vmatprep.subr.bf16.mxu0 %v1073
      %1481 = vmatpush1.bf16.msra.mxu0 %v1072
      %1482 = vmatprep.mubr.bf16.mxu0 %v397
      %1483 = vmatmul.mubr.bf16.gmra.mrb[0].mxu0 %v396
      %v1484 = vpop.f32.mrb[0].mxu0
      %v1485 = vadd.f32 0.0, %v1484
      %v1486 = vpop.f32.mrb[0].mxu0
      %v1487 = vadd.f32 0.0, %v1486
      %v1488 = vpop.f32.mrb[0].mxu0
      %v1489 = vadd.f32 0.0, %v1488
      %v1490 = vpop.f32.mrb[0].mxu0
      %v1491 = vadd.f32 0.0, %v1490
      %1492 = vdwg.mxu0
      %1493 = vmatprep.subr.bf16.mxu0 %v1079
      %1494 = vmatpush1.bf16.msra.mxu0 %v1078
      %1495 = vmatprep.subr.bf16.mxu0 %v1085
      %1496 = vmatpush1.bf16.msra.mxu0 %v1084
      %1497 = vmatprep.subr.bf16.mxu0 %v1091
      %1498 = vmatpush1.bf16.msra.mxu0 %v1090
      %1499 = vmatprep.subr.bf16.mxu0 %v1097
      %1500 = vmatpush1.bf16.msra.mxu0 %v1096
      %1501 = vmatprep.subr.bf16.mxu0 %v1103
      %1502 = vmatpush1.bf16.msra.mxu0 %v1102
      %1503 = vmatprep.subr.bf16.mxu0 %v1109
      %1504 = vmatpush1.bf16.msra.mxu0 %v1108
      %1505 = vmatprep.subr.bf16.mxu0 %v1115
      %1506 = vmatpush1.bf16.msra.mxu0 %v1114
      %1507 = vmatprep.subr.bf16.mxu0 %v1121
      %1508 = vmatpush1.bf16.msra.mxu0 %v1120
      %1509 = vmatprep.subr.bf16.mxu0 %v1127
      %1510 = vmatpush1.bf16.msra.mxu0 %v1126
      %1511 = vmatprep.subr.bf16.mxu0 %v1133
      %1512 = vmatpush1.bf16.msra.mxu0 %v1132
      %1513 = vmatprep.subr.bf16.mxu0 %v1139
      %1514 = vmatpush1.bf16.msra.mxu0 %v1138
      %1515 = vmatprep.subr.bf16.mxu0 %v1145
      %1516 = vmatpush1.bf16.msra.mxu0 %v1144
      %1517 = vmatprep.subr.bf16.mxu0 %v1151
      %1518 = vmatpush1.bf16.msra.mxu0 %v1150
      %1519 = vmatprep.subr.bf16.mxu0 %v1157
      %1520 = vmatpush1.bf16.msra.mxu0 %v1156
      %1521 = vmatprep.subr.bf16.mxu0 %v1163
      %1522 = vmatpush1.bf16.msra.mxu0 %v1162
      %1523 = vmatprep.subr.bf16.mxu0 %v1169
      %1524 = vmatpush1.bf16.msra.mxu0 %v1168
      %1525 = vmatprep.mubr.bf16.mxu0 %v399
      %1526 = vmatmul.mubr.bf16.gmra.mrb[0].mxu0 %v398
      %v1527 = vpop.f32.mrb[0].mxu0
      %v1528 = vadd.f32 %v1485, %v1527
      %v1529 = vpop.f32.mrb[0].mxu0
      %v1530 = vadd.f32 %v1487, %v1529
      %v1531 = vpop.f32.mrb[0].mxu0
      %v1532 = vadd.f32 %v1489, %v1531
      %v1533 = vpop.f32.mrb[0].mxu0
      %v1534 = vadd.f32 %v1491, %v1533
      %1535 = vdwg.mxu0
      %1536 = vmatprep.subr.bf16.mxu0 %v985
      %1537 = vmatpush1.bf16.msra.mxu0 %v984
      %1538 = vmatprep.subr.bf16.mxu0 %v991
      %1539 = vmatpush1.bf16.msra.mxu0 %v990
      %1540 = vmatprep.subr.bf16.mxu0 %v997
      %1541 = vmatpush1.bf16.msra.mxu0 %v996
      %1542 = vmatprep.subr.bf16.mxu0 %v1003
      %1543 = vmatpush1.bf16.msra.mxu0 %v1002
      %1544 = vmatprep.subr.bf16.mxu0 %v1009
      %1545 = vmatpush1.bf16.msra.mxu0 %v1008
      %1546 = vmatprep.subr.bf16.mxu0 %v1015
      %1547 = vmatpush1.bf16.msra.mxu0 %v1014
      %1548 = vmatprep.subr.bf16.mxu0 %v1021
      %1549 = vmatpush1.bf16.msra.mxu0 %v1020
      %1550 = vmatprep.subr.bf16.mxu0 %v1027
      %1551 = vmatpush1.bf16.msra.mxu0 %v1026
      %1552 = vmatprep.subr.bf16.mxu0 %v1033
      %1553 = vmatpush1.bf16.msra.mxu0 %v1032
      %1554 = vmatprep.subr.bf16.mxu0 %v1039
      %1555 = vmatpush1.bf16.msra.mxu0 %v1038
      %1556 = vmatprep.subr.bf16.mxu0 %v1045
      %1557 = vmatpush1.bf16.msra.mxu0 %v1044
      %1558 = vmatprep.subr.bf16.mxu0 %v1051
      %1559 = vmatpush1.bf16.msra.mxu0 %v1050
      %1560 = vmatprep.subr.bf16.mxu0 %v1057
      %1561 = vmatpush1.bf16.msra.mxu0 %v1056
      %1562 = vmatprep.subr.bf16.mxu0 %v1063
      %1563 = vmatpush1.bf16.msra.mxu0 %v1062
      %1564 = vmatprep.subr.bf16.mxu0 %v1069
      %1565 = vmatpush1.bf16.msra.mxu0 %v1068
      %1566 = vmatprep.subr.bf16.mxu0 %v1075
      %1567 = vmatpush1.bf16.msra.mxu0 %v1074
      %1568 = vmatprep.mubr.bf16.mxu0 %v397
      %1569 = vmatmul.mubr.bf16.gmra.mrb[0].mxu0 %v396
      %v1570 = vpop.f32.mrb[0].mxu0
      %v1571 = vadd.f32 0.0, %v1570
      %v1572 = vpop.f32.mrb[0].mxu0
      %v1573 = vadd.f32 0.0, %v1572
      %v1574 = vpop.f32.mrb[0].mxu0
      %v1575 = vadd.f32 0.0, %v1574
      %v1576 = vpop.f32.mrb[0].mxu0
      %v1577 = vadd.f32 0.0, %v1576
      %1578 = vdwg.mxu0
      %1579 = vmatprep.subr.bf16.mxu0 %v1081
      %1580 = vmatpush1.bf16.msra.mxu0 %v1080
      %1581 = vmatprep.subr.bf16.mxu0 %v1087
      %1582 = vmatpush1.bf16.msra.mxu0 %v1086
      %1583 = vmatprep.subr.bf16.mxu0 %v1093
      %1584 = vmatpush1.bf16.msra.mxu0 %v1092
      %1585 = vmatprep.subr.bf16.mxu0 %v1099
      %1586 = vmatpush1.bf16.msra.mxu0 %v1098
      %1587 = vmatprep.subr.bf16.mxu0 %v1105
      %1588 = vmatpush1.bf16.msra.mxu0 %v1104
      %1589 = vmatprep.subr.bf16.mxu0 %v1111
      %1590 = vmatpush1.bf16.msra.mxu0 %v1110
      %1591 = vmatprep.subr.bf16.mxu0 %v1117
      %1592 = vmatpush1.bf16.msra.mxu0 %v1116
      %1593 = vmatprep.subr.bf16.mxu0 %v1123
      %1594 = vmatpush1.bf16.msra.mxu0 %v1122
      %1595 = vmatprep.subr.bf16.mxu0 %v1129
      %1596 = vmatpush1.bf16.msra.mxu0 %v1128
      %1597 = vmatprep.subr.bf16.mxu0 %v1135
      %1598 = vmatpush1.bf16.msra.mxu0 %v1134
      %1599 = vmatprep.subr.bf16.mxu0 %v1141
      %1600 = vmatpush1.bf16.msra.mxu0 %v1140
      %1601 = vmatprep.subr.bf16.mxu0 %v1147
      %1602 = vmatpush1.bf16.msra.mxu0 %v1146
      %1603 = vmatprep.subr.bf16.mxu0 %v1153
      %1604 = vmatpush1.bf16.msra.mxu0 %v1152
      %1605 = vmatprep.subr.bf16.mxu0 %v1159
      %1606 = vmatpush1.bf16.msra.mxu0 %v1158
      %1607 = vmatprep.subr.bf16.mxu0 %v1165
      %1608 = vmatpush1.bf16.msra.mxu0 %v1164
      %1609 = vmatprep.subr.bf16.mxu0 %v1171
      %1610 = vmatpush1.bf16.msra.mxu0 %v1170
      %1611 = vmatprep.mubr.bf16.mxu0 %v399
      %1612 = vmatmul.mubr.bf16.gmra.mrb[0].mxu0 %v398
      %v1613 = vpop.f32.mrb[0].mxu0
      %v1614 = vadd.f32 %v1571, %v1613
      %v1615 = vpop.f32.mrb[0].mxu0
      %v1616 = vadd.f32 %v1573, %v1615
      %v1617 = vpop.f32.mrb[0].mxu0
      %v1618 = vadd.f32 %v1575, %v1617
      %v1619 = vpop.f32.mrb[0].mxu0
      %v1620 = vadd.f32 %v1577, %v1619
      %1621 = vdwg.mxu0
      %v1622 = vmul.f32 %v1442, %v1442
      %v1623 = vmul.f32 %v1444, %v1444
      %v1624 = vmul.f32 %v1528, %v1528
      %v1625 = vmul.f32 %v1446, %v1446
      %v1626 = vmul.f32 %v1448, %v1448
      %v1627 = vmul.f32 %v1532, %v1532
      %v1628 = vmul.f32 %v1530, %v1530
      %v1629 = vmul.f32 %v1614, %v1614
      %v1630 = vmul.f32 %v1616, %v1616
      %v1631 = vmul.f32 %v1534, %v1534
      %v1632 = vmul.f32 %v1618, %v1618
      %v1633 = vmul.f32 %v1620, %v1620
      %v1634 = vadd.f32 %v1622, %v1628
      %v1635 = vadd.f32 %v1623, %v1629
      %v1636 = vadd.f32 %v1624, %v1630
      %v1637 = vadd.f32 %v1625, %v1631
      %v1638 = vadd.f32 %v1626, %v1632
      %v1639 = vadd.f32 %v1627, %v1633
      %v1640 = vadd.f32 %v1634, 1e-06
      %v1641 = vadd.f32 %v1635, 1e-06
      %v1642 = vadd.f32 %v1636, 1e-06
      %v1643 = vadd.f32 %v1637, 1e-06
      %v1644 = vadd.f32 %v1638, 1e-06
      %v1645 = vadd.f32 %v1639, 1e-06
      %1646 = vst [vmem:[%s186] sm:$0xff] %v1640
      %1647 = vst [vmem:[%s186 + $0x8] sm:$0xff] %v1641
      %1648 = vst [vmem:[%s186 + $0x10] sm:$0xff] %v1642
      %1649 = vst [vmem:[%s186 + $0x18] sm:$0xff] %v1643
      %1650 = vst [vmem:[%s186 + $0x20] sm:$0xff] %v1644
      %1651 = vst [vmem:[%s186 + $0x28] sm:$0xff] %v1645
      %s1652 = smul.u32 2, %s18
      %p1653 = scmp.lt.s32.totalorder %s17, 1
      %s1654 = scalar_select %p1653, %s17, 1
      %p1655 = scmp.lt.s32.totalorder %s1652, 1
      %s1656 = scalar_select %p1655, %s1652, 1
      %s1657 = smul.addr %s1656, 3
      %s1658 = smul.addr %s1654, 6
      %s1659 = sadd.s32 %s1657, %s1658
      %s1660 = smul.addr %s1659, 8
      %s1661 = scalar_lea.vmem %s2, %s1660
      // Predicated region
      $region29: #{spectrogram.1} parent=27 // pred_check
        %p1662 = pneg %p94
      $region30: #{spectrogram.1} parent=27 // pred_check_branch
        %1664 = sbr.rel (%p1662) target = $region32
      $region31: #{spectrogram.1} parent=27 // pred_region
        %s1665 = smul.u32 2, %s18
      $region32: #{spectrogram.1} parent=27 // pred_fallthru
        _
    $region28: #{spectrogram.1} parent=5 // pred_fallthru
      _
    %p1666 = scmp.le.s32.totalorder 2, %s8
    // Predicated region
    $region33: #{spectrogram.1} parent=5 // pred_check
      %p1667 = pneg %p1666
    $region34: #{spectrogram.1} parent=5 // pred_check_branch
      %1669 = sbr.rel (%p1667) target = $region36
    $region35: #{spectrogram.1} parent=5 // pred_region
      %s1670 = ssub.s32 %s8, 2
      // Predicated region
      $region37: #{spectrogram.1} parent=35 // pred_check
        %p1671 = pneg %p100
      $region38: #{spectrogram.1} parent=35 // pred_check_branch
        %1673 = sbr.rel (%p1671) target = $region40
      $region39: #{spectrogram.1} parent=35 // pred_region
        %s1674 = smul.u32 2, %s20
        %p1675 = scmp.lt.s32.totalorder %s19, 1
        %s1676 = scalar_select %p1675, %s19, 1
        %p1677 = scmp.lt.s32.totalorder %s1674, 1
        %s1678 = scalar_select %p1677, %s1674, 1
        %s1679 = smul.addr %s1678, 3
        %s1680 = smul.addr %s1676, 6
        %s1681 = sadd.s32 %s1679, %s1680
        %s1682 = smul.addr %s1681, 8
        %s1683 = scalar_lea.vmem %s2, %s1682
      $region40: #{spectrogram.1} parent=35 // pred_fallthru
        _
    $region36: #{spectrogram.1} parent=5 // pred_fallthru
      _
  $region6: #{spectrogram.1} parent=0 // loop_footer
    %s12 = sadd.s32 1, %s8
  $region7: #{spectrogram.1} parent=0 // loop_footer_branch
    %7 = sbr.rel target = $region3
  $region8: #{spectrogram.1} parent=0 // loop_exit
    _

</llo_original>
